<compile_context>
chip_gen: v7x
topology: tpu7x:2x2x1
jax: 0.10.0
libtpu: 0.0.40
codegen_flags: <defaults>
</compile_context>

<pallas_src>
import numpy as np
import jax
import jax.numpy as jnp
from jax.experimental import pallas as pl
from jax.experimental.pallas import tpu as pltpu


def _features_linear_kernel(idx_ref, table_ref, bias_ref, out_ref):
    # idx_ref  : (F, TB)  int32   field indices, batch on lanes
    # table_ref: (TV, 1)  f32     one vocab tile of the embedding table
    # bias_ref : (1, 1)   f32
    # out_ref  : (1, 1, TB) f32   resident across the vocab grid axis
    k = pl.program_id(1)                          # vocab tile index (reduction axis)

    idx_t = idx_ref[...]                          # (F, TB) int32
    tbl = table_ref[...]                          # (TV, 1) f32
    num_fields, tb = idx_t.shape
    tv = tbl.shape[0]

    # absolute vocab ids covered by this tile, laid out along sublanes
    v_ids = k * tv + jax.lax.broadcasted_iota(jnp.int32, (tv, tb), 0)

    # per-field one-hots, tree-summed (independent vreg streams for the 4 VALUs)
    onehots = [
        (idx_t[f:f + 1, :] == v_ids).astype(jnp.float32)   # (TV, TB)
        for f in range(num_fields)
    ]
    while len(onehots) > 1:
        nxt = [onehots[j] + onehots[j + 1] for j in range(0, len(onehots) - 1, 2)]
        if len(onehots) % 2 == 1:
            nxt.append(onehots[-1])
        onehots = nxt
    counts = onehots[0]                           # (TV, TB)

    # weight by the table column (lane-broadcast) and reduce over the vocab tile
    tbl_b = jnp.broadcast_to(tbl, (tv, tb))       # (TV, TB)
    partial = jnp.sum(counts * tbl_b, axis=0, keepdims=True)   # (1, TB)

    @pl.when(k == 0)
    def _():
        out_ref[...] = jnp.broadcast_to(bias_ref[...].reshape(1, 1, 1), out_ref.shape)

    out_ref[...] += partial.reshape(1, 1, tb)


def features_linear(x_idx, table, bias, offsets, *, tile_b=128, tile_v=128):
    """FeaturesLinear forward.

    x_idx  : (B, F) integer raw field indices
    table  : (vocab, 1) f32 embedding table
    bias   : (1,) f32
    offsets: (F,) int32 per-field offsets
    returns: (B, 1) f32
    """
    B, F = x_idx.shape
    vocab, out_dim = table.shape
    assert out_dim == 1, "optimized kernel targets out_dim == 1 (module default)"

    # glue: add per-field offsets (x + offsets.unsqueeze(0) in torch)
    idx = x_idx.astype(jnp.int32) + offsets[None, :].astype(jnp.int32)

    # glue: pad batch to a tile multiple, transpose so batch lies on lanes
    B_pad = ((B + tile_b - 1) // tile_b) * tile_b
    if B_pad != B:
        idx = jnp.pad(idx, ((0, B_pad - B), (0, 0)))
    idx_t = idx.T                                  # (F, B_pad)

    # glue: pad vocab to a tile multiple (pad rows are zero and never indexed)
    vocab_pad = ((vocab + tile_v - 1) // tile_v) * tile_v
    table_p = jnp.zeros((vocab_pad, 1), jnp.float32).at[:vocab].set(
        table.astype(jnp.float32))
    bias2d = bias.reshape(1, 1).astype(jnp.float32)

    nb = B_pad // tile_b                           # batch tiles  ("parallel")
    nv = vocab_pad // tile_v                       # vocab tiles  ("arbitrary" reduction)

    out3 = pl.pallas_call(
        _features_linear_kernel,
        out_shape=jax.ShapeDtypeStruct((nb, 1, tile_b), jnp.float32),
        grid_spec=pltpu.PrefetchScalarGridSpec(
            num_scalar_prefetch=0,
            grid=(nb, nv),
            in_specs=[
                pl.BlockSpec((F, tile_b), lambda i, k: (0, i)),     # indices (batch on lanes)
                pl.BlockSpec((tile_v, 1), lambda i, k: (k, 0)),     # one vocab tile
                pl.BlockSpec((1, 1), lambda i, k: (0, 0)),          # bias
            ],
            out_specs=pl.BlockSpec((1, 1, tile_b), lambda i, k: (i, 0, 0)),
        ),
        compiler_params=pltpu.CompilerParams(
            dimension_semantics=("parallel", "arbitrary")),
    )(idx_t, table_p, bias2d)

    # glue: lane-dense (nb, 1, tile_b) -> (B, 1)
    return out3.reshape(B_pad)[:B].reshape(B, 1)


if __name__ == "__main__":
    # module config consistent with (batch, num_fields) -> (batch, 1)
    field_dims = np.array([3, 4, 5, 2, 6, 3, 4, 5, 8], dtype=np.int64)   # 9 fields
    output_dim = 1
    vocab = int(field_dims.sum())
    offsets_np = np.array((0, *np.cumsum(field_dims)[:-1]), dtype=np.int64)

    batch = 256                     # matches the module's documented (256, 9) input
    num_fields = len(field_dims)

    key = jax.random.PRNGKey(0)
    k_emb, k_x = jax.random.split(key)

    # deterministic parameter init (nn.Embedding default: N(0, 1)); bias = zeros
    table = jax.random.normal(k_emb, (vocab, output_dim), dtype=jnp.float32)
    bias = jnp.zeros((output_dim,), dtype=jnp.float32)

    # deterministic inputs: each field index in [0, field_dims[f])
    u = jax.random.uniform(k_x, (batch, num_fields))
    x = jnp.floor(u * jnp.asarray(field_dims, dtype=jnp.float32)).astype(jnp.int32)

    offsets = jnp.asarray(offsets_np, dtype=jnp.int32)

    out = features_linear(x, table, bias, offsets, tile_b=128, tile_v=128)
    out = jax.block_until_ready(out)

    # reference check in plain JAX (same math as the torch module)
    idx_ref = x + offsets[None, :]
    ref = jnp.take(table, idx_ref, axis=0).sum(axis=1) + bias
    assert out.shape == (batch, output_dim)
    np.testing.assert_allclose(np.asarray(out), np.asarray(ref), rtol=1e-5, atol=1e-5)

    print("KERNEL_OK")
</pallas_src>

<mosaic_0001>
module attributes {stable_mosaic.version = 11 : i64} {
  func.func @_features_linear_kernel(%arg0: i32, %arg1: i32, %arg2: memref<9x128xi32, #tpu.memory_space<vmem>>, %arg3: memref<128x1xf32, #tpu.memory_space<vmem>>, %arg4: memref<1x1xf32, #tpu.memory_space<vmem>>, %arg5: memref<1x1x128xf32, #tpu.memory_space<vmem>>) attributes {dimension_semantics = [#tpu.dimension_semantics<parallel>, #tpu.dimension_semantics<arbitrary>], iteration_bounds = array<i64: 2, 1>, scalar_prefetch = 0 : i64, scratch_operands = 0 : i64, tpu.core_type = #tpu.core_type<tc>, window_params = [{transform_indices = @transform_0, window_bounds = array<i64: 9, 128>}, {transform_indices = @transform_1, window_bounds = array<i64: 128, 1>}, {pipeline_mode = #tpu.pipeline_mode<synchronous>, transform_indices = @transform_2, window_bounds = array<i64: 1, 1>}, {transform_indices = @transform_3, window_bounds = array<i64: 1, 1, 128>}]} {
    %c0 = arith.constant 0 : index
    %c0_0 = arith.constant 0 : index
    %0 = vector.load %arg2[%c0, %c0_0] : memref<9x128xi32, #tpu.memory_space<vmem>>, vector<9x128xi32>
    %c0_1 = arith.constant 0 : index
    %c0_2 = arith.constant 0 : index
    %1 = vector.load %arg3[%c0_1, %c0_2] : memref<128x1xf32, #tpu.memory_space<vmem>>, vector<128x1xf32>
    %c128_i32 = arith.constant 128 : i32
    %2 = arith.muli %arg1, %c128_i32 : i32
    %3 = tpu.iota {dimensions = array<i32: 0>} : vector<128x128xi32>
    %4 = vector.broadcast %2 : i32 to vector<128x128xi32>
    %5 = arith.addi %4, %3 : vector<128x128xi32>
    %6 = vector.extract_strided_slice %0 {offsets = [0, 0], sizes = [1, 128], strides = [1, 1]} : vector<9x128xi32> to vector<1x128xi32>
    %7 = vector.broadcast %6 : vector<1x128xi32> to vector<128x128xi32>
    %8 = arith.cmpi eq, %7, %5 : vector<128x128xi32>
    %9 = arith.extui %8 : vector<128x128xi1> to vector<128x128xi32>
    %10 = arith.sitofp %9 : vector<128x128xi32> to vector<128x128xf32>
    %11 = vector.extract_strided_slice %0 {offsets = [1, 0], sizes = [1, 128], strides = [1, 1]} : vector<9x128xi32> to vector<1x128xi32>
    %12 = vector.broadcast %11 : vector<1x128xi32> to vector<128x128xi32>
    %13 = arith.cmpi eq, %12, %5 : vector<128x128xi32>
    %14 = arith.extui %13 : vector<128x128xi1> to vector<128x128xi32>
    %15 = arith.sitofp %14 : vector<128x128xi32> to vector<128x128xf32>
    %16 = vector.extract_strided_slice %0 {offsets = [2, 0], sizes = [1, 128], strides = [1, 1]} : vector<9x128xi32> to vector<1x128xi32>
    %17 = vector.broadcast %16 : vector<1x128xi32> to vector<128x128xi32>
    %18 = arith.cmpi eq, %17, %5 : vector<128x128xi32>
    %19 = arith.extui %18 : vector<128x128xi1> to vector<128x128xi32>
    %20 = arith.sitofp %19 : vector<128x128xi32> to vector<128x128xf32>
    %21 = vector.extract_strided_slice %0 {offsets = [3, 0], sizes = [1, 128], strides = [1, 1]} : vector<9x128xi32> to vector<1x128xi32>
    %22 = vector.broadcast %21 : vector<1x128xi32> to vector<128x128xi32>
    %23 = arith.cmpi eq, %22, %5 : vector<128x128xi32>
    %24 = arith.extui %23 : vector<128x128xi1> to vector<128x128xi32>
    %25 = arith.sitofp %24 : vector<128x128xi32> to vector<128x128xf32>
    %26 = vector.extract_strided_slice %0 {offsets = [4, 0], sizes = [1, 128], strides = [1, 1]} : vector<9x128xi32> to vector<1x128xi32>
    %27 = vector.broadcast %26 : vector<1x128xi32> to vector<128x128xi32>
    %28 = arith.cmpi eq, %27, %5 : vector<128x128xi32>
    %29 = arith.extui %28 : vector<128x128xi1> to vector<128x128xi32>
    %30 = arith.sitofp %29 : vector<128x128xi32> to vector<128x128xf32>
    %31 = vector.extract_strided_slice %0 {offsets = [5, 0], sizes = [1, 128], strides = [1, 1]} : vector<9x128xi32> to vector<1x128xi32>
    %32 = vector.broadcast %31 : vector<1x128xi32> to vector<128x128xi32>
    %33 = arith.cmpi eq, %32, %5 : vector<128x128xi32>
    %34 = arith.extui %33 : vector<128x128xi1> to vector<128x128xi32>
    %35 = arith.sitofp %34 : vector<128x128xi32> to vector<128x128xf32>
    %36 = vector.extract_strided_slice %0 {offsets = [6, 0], sizes = [1, 128], strides = [1, 1]} : vector<9x128xi32> to vector<1x128xi32>
    %37 = vector.broadcast %36 : vector<1x128xi32> to vector<128x128xi32>
    %38 = arith.cmpi eq, %37, %5 : vector<128x128xi32>
    %39 = arith.extui %38 : vector<128x128xi1> to vector<128x128xi32>
    %40 = arith.sitofp %39 : vector<128x128xi32> to vector<128x128xf32>
    %41 = vector.extract_strided_slice %0 {offsets = [7, 0], sizes = [1, 128], strides = [1, 1]} : vector<9x128xi32> to vector<1x128xi32>
    %42 = vector.broadcast %41 : vector<1x128xi32> to vector<128x128xi32>
    %43 = arith.cmpi eq, %42, %5 : vector<128x128xi32>
    %44 = arith.extui %43 : vector<128x128xi1> to vector<128x128xi32>
    %45 = arith.sitofp %44 : vector<128x128xi32> to vector<128x128xf32>
    %46 = vector.extract_strided_slice %0 {offsets = [8, 0], sizes = [1, 128], strides = [1, 1]} : vector<9x128xi32> to vector<1x128xi32>
    %47 = vector.broadcast %46 : vector<1x128xi32> to vector<128x128xi32>
    %48 = arith.cmpi eq, %47, %5 : vector<128x128xi32>
    %49 = arith.extui %48 : vector<128x128xi1> to vector<128x128xi32>
    %50 = arith.sitofp %49 : vector<128x128xi32> to vector<128x128xf32>
    %51 = arith.addf %10, %15 : vector<128x128xf32>
    %52 = arith.addf %20, %25 : vector<128x128xf32>
    %53 = arith.addf %30, %35 : vector<128x128xf32>
    %54 = arith.addf %40, %45 : vector<128x128xf32>
    %55 = arith.addf %51, %52 : vector<128x128xf32>
    %56 = arith.addf %53, %54 : vector<128x128xf32>
    %57 = arith.addf %55, %56 : vector<128x128xf32>
    %58 = arith.addf %57, %50 : vector<128x128xf32>
    %59 = vector.shape_cast %1 : vector<128x1xf32> to vector<128x1xf32>
    %60 = vector.broadcast %59 : vector<128x1xf32> to vector<128x128xf32>
    %61 = arith.mulf %58, %60 : vector<128x128xf32>
    %cst = arith.constant dense<0.000000e+00> : vector<128xf32>
    %62 = vector.multi_reduction <add>, %61, %cst [0] : vector<128x128xf32> to vector<128xf32>
    %63 = vector.shape_cast %62 : vector<128xf32> to vector<1x128xf32>
    %c0_i32 = arith.constant 0 : i32
    %64 = arith.cmpi eq, %arg1, %c0_i32 : i32
    %65 = arith.extui %64 : i1 to i32
    %c0_i32_3 = arith.constant 0 : i32
    %66 = arith.cmpi ne, %65, %c0_i32_3 : i32
    scf.if %66 {
      %c0_10 = arith.constant 0 : index
      %c0_11 = arith.constant 0 : index
      %71 = vector.load %arg4[%c0_10, %c0_11] : memref<1x1xf32, #tpu.memory_space<vmem>>, vector<1x1xf32>
      %72 = vector.shape_cast %71 : vector<1x1xf32> to vector<1x1x1xf32>
      %73 = vector.shape_cast %72 : vector<1x1x1xf32> to vector<1x1x1xf32>
      %74 = vector.broadcast %73 : vector<1x1x1xf32> to vector<1x1x128xf32>
      %c0_12 = arith.constant 0 : index
      %c0_13 = arith.constant 0 : index
      %c0_14 = arith.constant 0 : index
      %75 = vector.load %arg5[%c0_12, %c0_13, %c0_14] : memref<1x1x128xf32, #tpu.memory_space<vmem>>, vector<1x1x128xf32>
      tpu.vector_store %arg5[%c0_12, %c0_13, %c0_14], %74 {strides = array<i32>} : memref<1x1x128xf32, #tpu.memory_space<vmem>>, vector<1x1x128xf32>,
    } else {
    }
    %c0_4 = arith.constant 0 : index
    %c0_5 = arith.constant 0 : index
    %c0_6 = arith.constant 0 : index
    %67 = vector.load %arg5[%c0_4, %c0_5, %c0_6] : memref<1x1x128xf32, #tpu.memory_space<vmem>>, vector<1x1x128xf32>
    %68 = vector.shape_cast %63 : vector<1x128xf32> to vector<1x1x128xf32>
    %69 = arith.addf %67, %68 : vector<1x1x128xf32>
    %c0_7 = arith.constant 0 : index
    %c0_8 = arith.constant 0 : index
    %c0_9 = arith.constant 0 : index
    %70 = vector.load %arg5[%c0_7, %c0_8, %c0_9] : memref<1x1x128xf32, #tpu.memory_space<vmem>>, vector<1x1x128xf32>
    tpu.vector_store %arg5[%c0_7, %c0_8, %c0_9], %69 {strides = array<i32>} : memref<1x1x128xf32, #tpu.memory_space<vmem>>, vector<1x1x128xf32>,
    return
  }
  func.func @transform_0(%arg0: i32, %arg1: i32) -> (i32, i32) {
    %c0_i32 = arith.constant 0 : i32
    %c0_i32_0 = arith.constant 0 : i32
    return %c0_i32, %arg0 : i32, i32
  }
  func.func @transform_1(%arg0: i32, %arg1: i32) -> (i32, i32) {
    %c0_i32 = arith.constant 0 : i32
    %c0_i32_0 = arith.constant 0 : i32
    return %arg1, %c0_i32 : i32, i32
  }
  func.func @transform_2(%arg0: i32, %arg1: i32) -> (i32, i32) {
    %c0_i32 = arith.constant 0 : i32
    %c0_i32_0 = arith.constant 0 : i32
    %c0_i32_1 = arith.constant 0 : i32
    return %c0_i32, %c0_i32_0 : i32, i32
  }
  func.func @transform_3(%arg0: i32, %arg1: i32) -> (i32, i32, i32) {
    %c0_i32 = arith.constant 0 : i32
    %c0_i32_0 = arith.constant 0 : i32
    %c0_i32_1 = arith.constant 0 : i32
    return %arg0, %c0_i32, %c0_i32_0 : i32, i32, i32
  }
}

</mosaic_0001>

<llo_original>
// kernel: tpu_custom_call.1
$region0: #{tpu_custom_call.1}
  #allocation0 [shape = 'u32[]', space=smem, size = 0x4, offset = 0x4, fixed_abs, tag = 'smem constant byte address 0x4 - core index']
  #allocation1 [shape = 'u32[144,128]{1,0:T(1,128)}', space=vmem, size = 0x12000, scoped, tag = 'internal scratch']
  #allocation2 [shape = 'f32[1,1]{1,0:T(1,128)S(1)}', space=vmem, size = 0x200, scoped, tag = 'scoped memory for tpu_custom_call.1']
  %s0 = inlined_call_operand.vmem [shape: s32[9,256], index: 0, kind: input, shape index: {}]
  %s1 = inlined_call_operand.vmem [shape: f32[128,1], index: 1, kind: input, shape index: {}]
  %s2 = inlined_call_operand.<no memory space> [shape: f32[1,1], index: 2, kind: input, shape index: {}]
  %s3 = inlined_call_operand.hbm [shape: f32[2,1,128], index: 3, kind: output, shape index: {}]
  %s4 = sld [smem:[#allocation0]]
  $region87: #{tpu_custom_call.1} parent=0
    _
  %s6 = ssub.s32 1, %s4
  %s7 = scalar_select 0, %s6, %s4
  %v8 = vstv %s2
  %9 = vst [vmem:[#allocation2] sm:$0x1] %v8
  $region1: #{tpu_custom_call.1} parent=0
    #allocation3 [shape = 'u8[16384]{0}', space=vmem, size = 0x4000, scoped, tag = 'input window, operand 0']
    #allocation4 [shape = 'u8[1024]{0}', space=vmem, size = 0x400, scoped, tag = 'output window, operand 0']
    #allocation5 [shape = 's32[2]{0}', space=sflag, size = 0x8, scoped, tag = 'scoped memory for tpu_custom_call.1']
    %10 = vsyncpa [#allocation5], 0
    %s11 = scalar_lea.sflag [#allocation5], 1
    %12 = vsyncpa %s11, 0
    loop: start=0, step=1, limit=4
    $region2: #{tpu_custom_call.1} parent=1 // loop_pre_header
      _
    $region3: #{tpu_custom_call.1} parent=1 // loop_header
      %s14 = sphi 0, %s18
      %p15 = scmp.ge.s32.totalorder %s14, 4
      %s21 = sphi 0, %s33
      %s22 = sphi 0, %s29
      %s23 = sphi 0, %s21
      %s24 = sphi 0, %s22
      %s25 = sphi 0, %s23
      %s26 = sphi 0, %s24
      %s36 = sphi 0, %s38
      %s39 = sphi 0, %s36
      %s40 = sphi 0, %s39
      %s56 = sphi 0, %s40
      %s62 = sphi 0, %s64
      %s65 = sphi 0, %s62
      %s66 = sphi 0, %s65
      %s82 = sphi 0, %s66
      %s86 = sphi 0, %s86
      %s88 = sphi 0, %s86
      %s89 = sphi 0, %s88
      %s103 = sphi 0, %s89
      %s109 = sphi 0, %s111
      %s112 = sphi 0, %s109
      %s113 = sphi 0, %s112
      %s129 = sphi 0, %s113
    $region4: #{tpu_custom_call.1} parent=1 // loop_header_branch
      %17 = sbr.rel (%p15) target = $region8
    $region5: #{tpu_custom_call.1} parent=1 // loop_body
      %s19 = ssub.s32 %s14, 1
      %s20 = ssub.s32 %s14, 2
      %s27 = sadd.s32 1, %s22
      %p28 = scmp.ge.s32.totalorder %s27, 1
      %s29 = scalar_select %p28, 0, %s27
      %s30 = sadd.s32 1, %s21
      %s31 = scalar_select %p28, %s30, %s21
      %p32 = scmp.ge.s32.totalorder %s31, 2
      %s33 = scalar_select %p32, 0, %s31
      %s34 = ssub.s32 %s21, %s33
      %p35 = scmp.eq.s32.totalorder %s34, 0
      %s37 = sadd.s32 %s36, 1
      %s38 = scalar_select %p35, %s36, %s37
      %p41 = pneg %p35
      %p42 = scmp.eq.s32.totalorder %s14, 1
      %p43 = por %p41, %p42
      %p44 = scmp.ne.s32.totalorder %s36, %s39
      %p45 = scmp.eq.s32.totalorder %s14, 0
      %p46 = por %p44, %p45
      %p47 = scmp.ne.s32.totalorder %s36, %s39
      %p48 = scmp.eq.s32.totalorder %s19, 1
      %p49 = por %p47, %p48
      %p50 = scmp.ne.s32.totalorder %s39, %s40
      %p51 = scmp.eq.s32.totalorder %s19, 0
      %p52 = por %p50, %p51
      %p53 = scmp.ne.s32.totalorder %s39, %s40
      %p54 = scmp.eq.s32.totalorder %s20, 1
      %p55 = por %p53, %p54
      %p57 = scmp.ne.s32.totalorder %s40, %s56
      %p58 = scmp.eq.s32.totalorder %s20, 0
      %p59 = por %p57, %p58
      %s60 = ssub.s32 %s22, %s29
      %p61 = scmp.eq.s32.totalorder %s60, 0
      %s63 = sadd.s32 %s62, 1
      %s64 = scalar_select %p61, %s62, %s63
      %p67 = pneg %p61
      %p68 = scmp.eq.s32.totalorder %s14, 1
      %p69 = por %p67, %p68
      %p70 = scmp.ne.s32.totalorder %s62, %s65
      %p71 = scmp.eq.s32.totalorder %s14, 0
      %p72 = por %p70, %p71
      %p73 = scmp.ne.s32.totalorder %s62, %s65
      %p74 = scmp.eq.s32.totalorder %s19, 1
      %p75 = por %p73, %p74
      %p76 = scmp.ne.s32.totalorder %s65, %s66
      %p77 = scmp.eq.s32.totalorder %s19, 0
      %p78 = por %p76, %p77
      %p79 = scmp.ne.s32.totalorder %s65, %s66
      %p80 = scmp.eq.s32.totalorder %s20, 1
      %p81 = por %p79, %p80
      %p83 = scmp.ne.s32.totalorder %s66, %s82
      %p84 = scmp.eq.s32.totalorder %s20, 0
      %p85 = por %p83, %p84
      %s87 = sadd.s32 %s86, 1
      %p90 = scmp.eq.s32.totalorder %s14, 1
      %p91 = scmp.ne.s32.totalorder %s86, %s88
      %p92 = scmp.eq.s32.totalorder %s14, 0
      %p93 = por %p91, %p92
      %p94 = scmp.ne.s32.totalorder %s86, %s88
      %p95 = scmp.eq.s32.totalorder %s19, 1
      %p96 = por %p94, %p95
      %p97 = scmp.ne.s32.totalorder %s88, %s89
      %p98 = scmp.eq.s32.totalorder %s19, 0
      %p99 = por %p97, %p98
      %p100 = scmp.ne.s32.totalorder %s88, %s89
      %p101 = scmp.eq.s32.totalorder %s20, 1
      %p102 = por %p100, %p101
      %p104 = scmp.ne.s32.totalorder %s89, %s103
      %p105 = scmp.eq.s32.totalorder %s20, 0
      %p106 = por %p104, %p105
      %s107 = ssub.s32 %s21, %s33
      %p108 = scmp.eq.s32.totalorder %s107, 0
      %s110 = sadd.s32 %s109, 1
      %s111 = scalar_select %p108, %s109, %s110
      %p114 = pneg %p108
      %p115 = scmp.eq.s32.totalorder %s14, 1
      %p116 = por %p114, %p115
      %p117 = scmp.ne.s32.totalorder %s109, %s112
      %p118 = scmp.eq.s32.totalorder %s14, 0
      %p119 = por %p117, %p118
      %p120 = scmp.ne.s32.totalorder %s109, %s112
      %p121 = scmp.eq.s32.totalorder %s19, 1
      %p122 = por %p120, %p121
      %p123 = scmp.ne.s32.totalorder %s112, %s113
      %p124 = scmp.eq.s32.totalorder %s19, 0
      %p125 = por %p123, %p124
      %p126 = scmp.ne.s32.totalorder %s112, %s113
      %p127 = scmp.eq.s32.totalorder %s20, 1
      %p128 = por %p126, %p127
      %p130 = scmp.ne.s32.totalorder %s113, %s129
      %p131 = scmp.eq.s32.totalorder %s20, 0
      %p132 = por %p130, %p131
      %p133 = scmp.le.s32.totalorder 1, %s14
      %p134 = scmp.lt.s32.totalorder %s14, 3
      %p135 = pnand %p133, %p134
      %p136 = pneg %p135
      // Predicated region
      $region9: #{tpu_custom_call.1} parent=5 // pred_check
        _
      $region10: #{tpu_custom_call.1} parent=5 // pred_check_branch
        %138 = sbr.rel (%p135) target = $region12
      $region11: #{tpu_custom_call.1} parent=5 // pred_region
        %s139 = ssub.s32 %s14, 1
        // Predicated region
        $region13: #{tpu_custom_call.1} parent=11 // pred_check
          %p140 = pneg %p78
        $region14: #{tpu_custom_call.1} parent=11 // pred_check_branch
          %142 = sbr.rel (%p140) target = $region16
        $region15: #{tpu_custom_call.1} parent=11 // pred_region
          %s143 = smul.u32 16, %s24
          %p144 = scmp.lt.s32.totalorder %s143, 15
          %s145 = scalar_select %p144, %s143, 15
          %s146 = smul.addr %s145, 8
          %s147 = scalar_lea.vmem %s1, %s146
          %s148 = smul.u32 16, %s24
        $region16: #{tpu_custom_call.1} parent=11 // pred_fallthru
          _
        // Predicated region
        $region17: #{tpu_custom_call.1} parent=11 // pred_check
          %p149 = pneg %p99
        $region18: #{tpu_custom_call.1} parent=11 // pred_check_branch
          %151 = sbr.rel (%p149) target = $region20
        $region19: #{tpu_custom_call.1} parent=11 // pred_region
          _
        $region20: #{tpu_custom_call.1} parent=11 // pred_fallthru
          _
      $region12: #{tpu_custom_call.1} parent=5 // pred_fallthru
        _
      %p152 = scmp.lt.s32.totalorder %s14, 2
      // Predicated region
      $region21: #{tpu_custom_call.1} parent=5 // pred_check
        %p153 = pneg %p152
      $region22: #{tpu_custom_call.1} parent=5 // pred_check_branch
        %155 = sbr.rel (%p153) target = $region24
      $region23: #{tpu_custom_call.1} parent=5 // pred_region
        // Predicated region
        $region25: #{tpu_custom_call.1} parent=23 // pred_check
          %p156 = pneg %p46
        $region26: #{tpu_custom_call.1} parent=23 // pred_check_branch
          %158 = sbr.rel (%p156) target = $region28
        $region27: #{tpu_custom_call.1} parent=23 // pred_region
          %s159 = sand.u32 %s36, 1
          %s160 = sand.u32 %s36, 1
          %s161 = smul.addr %s160, 16
          %s162 = scalar_lea.vmem [#allocation3], %s161
          %s163 = smul.addr %s21, 8
          %s164 = scalar_lea.vmem %s0, %s163
          // Predicated region
          $region29: #{tpu_custom_call.1} parent=27 // pred_check
            _
          $region30: #{tpu_custom_call.1} parent=27 // pred_check_branch
            %166 = sbr.rel (0) target = $region32
          $region31: #{tpu_custom_call.1} parent=27 // pred_region
            // Predicated region
            $region33: #{tpu_custom_call.1} parent=31 // pred_check
              _
            $region34: #{tpu_custom_call.1} parent=31 // pred_check_branch
              %168 = sbr.rel (0) target = $region36
            $region35: #{tpu_custom_call.1} parent=31 // pred_region
              // Predicated region
              $region48: #{tpu_custom_call.1} parent=35 // pred_check
                _
              $region49: #{tpu_custom_call.1} parent=35 // pred_check_branch
                %185 = sbr.rel (0) target = $region51
              $region50: #{tpu_custom_call.1} parent=35 // pred_region
                loop: start=0, step=1, limit=1
                $region52: #{tpu_custom_call.1} parent=50 // loop_pre_header
                  _
                $region53: #{tpu_custom_call.1} parent=50 // loop_header
                  %s187 = sphi 0, %s191
                  %p188 = scmp.ge.s32.totalorder %s187, 1
                  %s192 = sphi %s164, %s164
                  %s193 = sphi %s162, %s162
                $region54: #{tpu_custom_call.1} parent=50 // loop_header_branch
                  %190 = sbr.rel (%p188) target = $region58
                $region55: #{tpu_custom_call.1} parent=50 // loop_body
                  %v194 = vld [vmem:[%s192] sm:$0xff]
                  %195 = vst [vmem:[%s193] sm:$0xff] %v194
                  %v196 = vld [vmem:[%s192 + $0x10] sm:$0xff]
                  %197 = vst [vmem:[%s193 + $0x8] sm:$0xff] %v196
                $region56: #{tpu_custom_call.1} parent=50 // loop_footer
                  %s191 = sadd.s32 1, %s187
                $region57: #{tpu_custom_call.1} parent=50 // loop_footer_branch
                  %186 = sbr.rel target = $region53
                $region58: #{tpu_custom_call.1} parent=50 // loop_exit
                  _
              $region51: #{tpu_custom_call.1} parent=35 // pred_fallthru
                _
              // Predicated region
              $region59: #{tpu_custom_call.1} parent=35 // pred_check
                _
              $region60: #{tpu_custom_call.1} parent=35 // pred_check_branch
                %199 = sbr.rel target = $region62
              $region61: #{tpu_custom_call.1} parent=35 // pred_region
                _
              $region62: #{tpu_custom_call.1} parent=35 // pred_fallthru
                _
            $region36: #{tpu_custom_call.1} parent=31 // pred_fallthru
              _
            // Predicated region
            $region37: #{tpu_custom_call.1} parent=31 // pred_check
              _
            $region38: #{tpu_custom_call.1} parent=31 // pred_check_branch
              %170 = sbr.rel target = $region40
            $region39: #{tpu_custom_call.1} parent=31 // pred_region
              loop: start=0, step=1, limit=1
              $region41: #{tpu_custom_call.1} parent=39 // loop_pre_header
                _
              $region42: #{tpu_custom_call.1} parent=39 // loop_header
                %s173 = sphi 0, %s177
                %p174 = scmp.ge.s32.totalorder %s173, 1
                %s178 = sphi %s164, %s164
                %s179 = sphi %s162, %s162
              $region43: #{tpu_custom_call.1} parent=39 // loop_header_branch
                %176 = sbr.rel (%p174) target = $region47
              $region44: #{tpu_custom_call.1} parent=39 // loop_body
                %v180 = vld [vmem:[%s178] sm:$0xff]
                %181 = vst [vmem:[%s179] sm:$0xff] %v180
                %v182 = vld [vmem:[%s178 + $0x10] sm:$0xff]
                %183 = vst [vmem:[%s179 + $0x8] sm:$0xff] %v182
              $region45: #{tpu_custom_call.1} parent=39 // loop_footer
                %s177 = sadd.s32 1, %s173
              $region46: #{tpu_custom_call.1} parent=39 // loop_footer_branch
                %172 = sbr.rel target = $region42
              $region47: #{tpu_custom_call.1} parent=39 // loop_exit
                _
            $region40: #{tpu_custom_call.1} parent=31 // pred_fallthru
              _
          $region32: #{tpu_custom_call.1} parent=27 // pred_fallthru
            _
          %200 = vnop
        $region28: #{tpu_custom_call.1} parent=23 // pred_fallthru
          _
      $region24: #{tpu_custom_call.1} parent=5 // pred_fallthru
        _
      %p201 = scmp.le.s32.totalorder 1, %s14
      %p202 = scmp.lt.s32.totalorder %s14, 3
      %p203 = pnand %p201, %p202
      %p204 = pneg %p203
      // Predicated region
      $region63: #{tpu_custom_call.1} parent=5 // pred_check
        _
      $region64: #{tpu_custom_call.1} parent=5 // pred_check_branch
        %206 = sbr.rel (%p203) target = $region66
      $region65: #{tpu_custom_call.1} parent=5 // pred_region
        %s207 = ssub.s32 %s14, 1
        %s208 = sand.u32 %s39, 1
        %s209 = sand.u32 %s39, 1
        %s210 = smul.addr %s209, 16
        %s211 = scalar_lea.vmem [#allocation3], %s210
        // Predicated region
        $region67: #{tpu_custom_call.1} parent=65 // pred_check
          %p212 = pneg %p52
        $region68: #{tpu_custom_call.1} parent=65 // pred_check_branch
          %214 = sbr.rel (%p212) target = $region70
        $region69: #{tpu_custom_call.1} parent=65 // pred_region
          _
        $region70: #{tpu_custom_call.1} parent=65 // pred_fallthru
          _
        %s215 = sand.u32 %s39, 1
        %s216 = sand.u32 %s39, 1
        %s217 = smul.addr %s216, 16
        %s218 = scalar_lea.vmem [#allocation3], %s217
        %p219 = pneg %p52
        %p220 = pneg %p49
        %s221 = smul.u32 16, %s24
        %p222 = scmp.lt.s32.totalorder %s221, 15
        %s223 = scalar_select %p222, %s221, 15
        %s224 = smul.addr %s223, 8
        %s225 = scalar_lea.vmem %s1, %s224
        %p226 = pneg %p78
        %p227 = pneg %p75
        %p228 = pneg %p99
        %p229 = pneg %p96
        %p230 = pneg %p125
        %p231 = pneg %p122
        %s232 = sand.u32 %s112, 1
        %s233 = scalar_lea.sflag [#allocation5], %s232
        %s234 = sand.u32 %s112, 1
        %s235 = scalar_lea.vmem [#allocation4], %s234
        %s236 = smul.u32 16, %s24
        %p237 = scmp.lt.s32.totalorder %s236, 15
        %s238 = scalar_select %p237, %s236, 15
        %s239 = smul.addr %s238, 8
        %s240 = scalar_lea.vmem %s1, %s239
        %s241 = smul.u32 16, %s24
        %v242 = vld [vmem:[%s211] sm:$0xff]
        %v243 = vld [vmem:[%s211 + $0x8] sm:$0x1]
        %v244 = vld [vmem:[%s240] sm:$0xff]
        %v245 = vld [vmem:[%s240 + $0x8] sm:$0xff]
        %v246 = vld [vmem:[%s240 + $0x10] sm:$0xff]
        %v247 = vld [vmem:[%s240 + $0x18] sm:$0xff]
        %v248 = vld [vmem:[%s240 + $0x20] sm:$0xff]
        %v249 = vld [vmem:[%s240 + $0x28] sm:$0xff]
        %v250 = vld [vmem:[%s240 + $0x30] sm:$0xff]
        %v251 = vld [vmem:[%s240 + $0x38] sm:$0xff]
        %v252 = vld [vmem:[%s240 + $0x40] sm:$0xff]
        %v253 = vld [vmem:[%s240 + $0x48] sm:$0xff]
        %v254 = vld [vmem:[%s240 + $0x50] sm:$0xff]
        %v255 = vld [vmem:[%s240 + $0x58] sm:$0xff]
        %v256 = vld [vmem:[%s240 + $0x60] sm:$0xff]
        %v257 = vld [vmem:[%s240 + $0x68] sm:$0xff]
        %v258 = vld [vmem:[%s240 + $0x70] sm:$0xff]
        %v259 = vld [vmem:[%s240 + $0x78] sm:$0xff]
        %s260 = smul.u32 %s24, 128
        %v261 = vlaneseq
        %v262 = vshrl.u32 %v261, 7
        %v263 = vadd.s32 %v262, 8
        %v264 = vadd.s32 %v262, 16
        %v265 = vadd.s32 %v262, 24
        %v266 = vadd.s32 %v262, 32
        %v267 = vadd.s32 %v262, 40
        %v268 = vadd.s32 %v262, 48
        %v269 = vadd.s32 %v262, 56
        %v270 = vadd.s32 %v262, 64
        %v271 = vadd.s32 %v262, 72
        %v272 = vadd.s32 %v262, 80
        %v273 = vadd.s32 %v262, 88
        %v274 = vadd.s32 %v262, 96
        %v275 = vadd.s32 %v262, 104
        %v276 = vadd.s32 %v262, 112
        %v277 = vadd.s32 %v262, 120
        %v278 = vstv %s260
        %v279 = vadd.s32 %v278, %v262
        %v280 = vadd.s32 %v278, %v263
        %v281 = vadd.s32 %v278, %v264
        %v282 = vadd.s32 %v278, %v265
        %v283 = vadd.s32 %v278, %v266
        %v284 = vadd.s32 %v278, %v267
        %v285 = vadd.s32 %v278, %v268
        %v286 = vadd.s32 %v278, %v269
        %v287 = vadd.s32 %v278, %v270
        %v288 = vadd.s32 %v278, %v271
        %v289 = vadd.s32 %v278, %v272
        %v290 = vadd.s32 %v278, %v273
        %v291 = vadd.s32 %v278, %v274
        %v292 = vadd.s32 %v278, %v275
        %v293 = vadd.s32 %v278, %v276
        %v294 = vadd.s32 %v278, %v277
        %v295 = vlaneseq
        %v296 = vshrl.u32 %v295, 7
        %v297 = vsub.s32 0, %v296
        %v298 = vrot.slane %v242, %v297
        %vm299 = vcmp.eq.s32.totalorder %v298, %v279
        %vm300 = vcmp.eq.s32.totalorder %v298, %v280
        %vm301 = vcmp.eq.s32.totalorder %v298, %v281
        %vm302 = vcmp.eq.s32.totalorder %v298, %v282
        %vm303 = vcmp.eq.s32.totalorder %v298, %v283
        %vm304 = vcmp.eq.s32.totalorder %v298, %v284
        %vm305 = vcmp.eq.s32.totalorder %v298, %v285
        %vm306 = vcmp.eq.s32.totalorder %v298, %v286
        %vm307 = vcmp.eq.s32.totalorder %v298, %v287
        %vm308 = vcmp.eq.s32.totalorder %v298, %v288
        %vm309 = vcmp.eq.s32.totalorder %v298, %v289
        %vm310 = vcmp.eq.s32.totalorder %v298, %v290
        %vm311 = vcmp.eq.s32.totalorder %v298, %v291
        %vm312 = vcmp.eq.s32.totalorder %v298, %v292
        %vm313 = vcmp.eq.s32.totalorder %v298, %v293
        %vm314 = vcmp.eq.s32.totalorder %v298, %v294
        %v315 = vsel %vm299, 1, 0
        %v316 = vsel %vm300, 1, 0
        %v317 = vsel %vm301, 1, 0
        %v318 = vsel %vm302, 1, 0
        %v319 = vsel %vm303, 1, 0
        %v320 = vsel %vm304, 1, 0
        %v321 = vsel %vm305, 1, 0
        %v322 = vsel %vm306, 1, 0
        %v323 = vsel %vm307, 1, 0
        %v324 = vsel %vm308, 1, 0
        %v325 = vsel %vm309, 1, 0
        %v326 = vsel %vm310, 1, 0
        %v327 = vsel %vm311, 1, 0
        %v328 = vsel %vm312, 1, 0
        %v329 = vsel %vm313, 1, 0
        %v330 = vsel %vm314, 1, 0
        %v331 = vcvt.s32.f32 %v315
        %v332 = vcvt.s32.f32 %v316
        %v333 = vcvt.s32.f32 %v317
        %v334 = vcvt.s32.f32 %v318
        %v335 = vcvt.s32.f32 %v319
        %v336 = vcvt.s32.f32 %v320
        %v337 = vcvt.s32.f32 %v321
        %v338 = vcvt.s32.f32 %v322
        %v339 = vcvt.s32.f32 %v323
        %v340 = vcvt.s32.f32 %v324
        %v341 = vcvt.s32.f32 %v325
        %v342 = vcvt.s32.f32 %v326
        %v343 = vcvt.s32.f32 %v327
        %v344 = vcvt.s32.f32 %v328
        %v345 = vcvt.s32.f32 %v329
        %v346 = vcvt.s32.f32 %v330
        %v347 = vlaneseq
        %v348 = vshrl.u32 %v347, 7
        %v349 = vsub.s32 1, %v348
        %v350 = vrot.slane %v242, %v349
        %vm351 = vcmp.eq.s32.totalorder %v350, %v279
        %vm352 = vcmp.eq.s32.totalorder %v350, %v280
        %vm353 = vcmp.eq.s32.totalorder %v350, %v281
        %vm354 = vcmp.eq.s32.totalorder %v350, %v282
        %vm355 = vcmp.eq.s32.totalorder %v350, %v283
        %vm356 = vcmp.eq.s32.totalorder %v350, %v284
        %vm357 = vcmp.eq.s32.totalorder %v350, %v285
        %vm358 = vcmp.eq.s32.totalorder %v350, %v286
        %vm359 = vcmp.eq.s32.totalorder %v350, %v287
        %vm360 = vcmp.eq.s32.totalorder %v350, %v288
        %vm361 = vcmp.eq.s32.totalorder %v350, %v289
        %vm362 = vcmp.eq.s32.totalorder %v350, %v290
        %vm363 = vcmp.eq.s32.totalorder %v350, %v291
        %vm364 = vcmp.eq.s32.totalorder %v350, %v292
        %vm365 = vcmp.eq.s32.totalorder %v350, %v293
        %vm366 = vcmp.eq.s32.totalorder %v350, %v294
        %v367 = vsel %vm351, 1, 0
        %v368 = vsel %vm352, 1, 0
        %v369 = vsel %vm353, 1, 0
        %v370 = vsel %vm354, 1, 0
        %v371 = vsel %vm355, 1, 0
        %v372 = vsel %vm356, 1, 0
        %v373 = vsel %vm357, 1, 0
        %v374 = vsel %vm358, 1, 0
        %v375 = vsel %vm359, 1, 0
        %v376 = vsel %vm360, 1, 0
        %v377 = vsel %vm361, 1, 0
        %v378 = vsel %vm362, 1, 0
        %v379 = vsel %vm363, 1, 0
        %v380 = vsel %vm364, 1, 0
        %v381 = vsel %vm365, 1, 0
        %v382 = vsel %vm366, 1, 0
        %v383 = vcvt.s32.f32 %v367
        %v384 = vcvt.s32.f32 %v368
        %v385 = vcvt.s32.f32 %v369
        %v386 = vcvt.s32.f32 %v370
        %v387 = vcvt.s32.f32 %v371
        %v388 = vcvt.s32.f32 %v372
        %v389 = vcvt.s32.f32 %v373
        %v390 = vcvt.s32.f32 %v374
        %v391 = vcvt.s32.f32 %v375
        %v392 = vcvt.s32.f32 %v376
        %v393 = vcvt.s32.f32 %v377
        %v394 = vcvt.s32.f32 %v378
        %v395 = vcvt.s32.f32 %v379
        %v396 = vcvt.s32.f32 %v380
        %v397 = vcvt.s32.f32 %v381
        %v398 = vcvt.s32.f32 %v382
        %v399 = vlaneseq
        %v400 = vshrl.u32 %v399, 7
        %v401 = vsub.s32 2, %v400
        %v402 = vrot.slane %v242, %v401
        %vm403 = vcmp.eq.s32.totalorder %v402, %v279
        %vm404 = vcmp.eq.s32.totalorder %v402, %v280
        %vm405 = vcmp.eq.s32.totalorder %v402, %v281
        %vm406 = vcmp.eq.s32.totalorder %v402, %v282
        %vm407 = vcmp.eq.s32.totalorder %v402, %v283
        %vm408 = vcmp.eq.s32.totalorder %v402, %v284
        %vm409 = vcmp.eq.s32.totalorder %v402, %v285
        %vm410 = vcmp.eq.s32.totalorder %v402, %v286
        %vm411 = vcmp.eq.s32.totalorder %v402, %v287
        %vm412 = vcmp.eq.s32.totalorder %v402, %v288
        %vm413 = vcmp.eq.s32.totalorder %v402, %v289
        %vm414 = vcmp.eq.s32.totalorder %v402, %v290
        %vm415 = vcmp.eq.s32.totalorder %v402, %v291
        %vm416 = vcmp.eq.s32.totalorder %v402, %v292
        %vm417 = vcmp.eq.s32.totalorder %v402, %v293
        %vm418 = vcmp.eq.s32.totalorder %v402, %v294
        %v419 = vsel %vm403, 1, 0
        %v420 = vsel %vm404, 1, 0
        %v421 = vsel %vm405, 1, 0
        %v422 = vsel %vm406, 1, 0
        %v423 = vsel %vm407, 1, 0
        %v424 = vsel %vm408, 1, 0
        %v425 = vsel %vm409, 1, 0
        %v426 = vsel %vm410, 1, 0
        %v427 = vsel %vm411, 1, 0
        %v428 = vsel %vm412, 1, 0
        %v429 = vsel %vm413, 1, 0
        %v430 = vsel %vm414, 1, 0
        %v431 = vsel %vm415, 1, 0
        %v432 = vsel %vm416, 1, 0
        %v433 = vsel %vm417, 1, 0
        %v434 = vsel %vm418, 1, 0
        %v435 = vcvt.s32.f32 %v419
        %v436 = vcvt.s32.f32 %v420
        %v437 = vcvt.s32.f32 %v421
        %v438 = vcvt.s32.f32 %v422
        %v439 = vcvt.s32.f32 %v423
        %v440 = vcvt.s32.f32 %v424
        %v441 = vcvt.s32.f32 %v425
        %v442 = vcvt.s32.f32 %v426
        %v443 = vcvt.s32.f32 %v427
        %v444 = vcvt.s32.f32 %v428
        %v445 = vcvt.s32.f32 %v429
        %v446 = vcvt.s32.f32 %v430
        %v447 = vcvt.s32.f32 %v431
        %v448 = vcvt.s32.f32 %v432
        %v449 = vcvt.s32.f32 %v433
        %v450 = vcvt.s32.f32 %v434
        %v451 = vlaneseq
        %v452 = vshrl.u32 %v451, 7
        %v453 = vsub.s32 3, %v452
        %v454 = vrot.slane %v242, %v453
        %vm455 = vcmp.eq.s32.totalorder %v454, %v279
        %vm456 = vcmp.eq.s32.totalorder %v454, %v280
        %vm457 = vcmp.eq.s32.totalorder %v454, %v281
        %vm458 = vcmp.eq.s32.totalorder %v454, %v282
        %vm459 = vcmp.eq.s32.totalorder %v454, %v283
        %vm460 = vcmp.eq.s32.totalorder %v454, %v284
        %vm461 = vcmp.eq.s32.totalorder %v454, %v285
        %vm462 = vcmp.eq.s32.totalorder %v454, %v286
        %vm463 = vcmp.eq.s32.totalorder %v454, %v287
        %vm464 = vcmp.eq.s32.totalorder %v454, %v288
        %vm465 = vcmp.eq.s32.totalorder %v454, %v289
        %vm466 = vcmp.eq.s32.totalorder %v454, %v290
        %vm467 = vcmp.eq.s32.totalorder %v454, %v291
        %vm468 = vcmp.eq.s32.totalorder %v454, %v292
        %vm469 = vcmp.eq.s32.totalorder %v454, %v293
        %vm470 = vcmp.eq.s32.totalorder %v454, %v294
        %v471 = vsel %vm455, 1, 0
        %v472 = vsel %vm456, 1, 0
        %v473 = vsel %vm457, 1, 0
        %v474 = vsel %vm458, 1, 0
        %v475 = vsel %vm459, 1, 0
        %v476 = vsel %vm460, 1, 0
        %v477 = vsel %vm461, 1, 0
        %v478 = vsel %vm462, 1, 0
        %v479 = vsel %vm463, 1, 0
        %v480 = vsel %vm464, 1, 0
        %v481 = vsel %vm465, 1, 0
        %v482 = vsel %vm466, 1, 0
        %v483 = vsel %vm467, 1, 0
        %v484 = vsel %vm468, 1, 0
        %v485 = vsel %vm469, 1, 0
        %v486 = vsel %vm470, 1, 0
        %v487 = vcvt.s32.f32 %v471
        %v488 = vcvt.s32.f32 %v472
        %v489 = vcvt.s32.f32 %v473
        %v490 = vcvt.s32.f32 %v474
        %v491 = vcvt.s32.f32 %v475
        %v492 = vcvt.s32.f32 %v476
        %v493 = vcvt.s32.f32 %v477
        %v494 = vcvt.s32.f32 %v478
        %v495 = vcvt.s32.f32 %v479
        %v496 = vcvt.s32.f32 %v480
        %v497 = vcvt.s32.f32 %v481
        %v498 = vcvt.s32.f32 %v482
        %v499 = vcvt.s32.f32 %v483
        %v500 = vcvt.s32.f32 %v484
        %v501 = vcvt.s32.f32 %v485
        %v502 = vcvt.s32.f32 %v486
        %v503 = vlaneseq
        %v504 = vshrl.u32 %v503, 7
        %v505 = vsub.s32 4, %v504
        %v506 = vrot.slane %v242, %v505
        %vm507 = vcmp.eq.s32.totalorder %v506, %v279
        %vm508 = vcmp.eq.s32.totalorder %v506, %v280
        %vm509 = vcmp.eq.s32.totalorder %v506, %v281
        %vm510 = vcmp.eq.s32.totalorder %v506, %v282
        %vm511 = vcmp.eq.s32.totalorder %v506, %v283
        %vm512 = vcmp.eq.s32.totalorder %v506, %v284
        %vm513 = vcmp.eq.s32.totalorder %v506, %v285
        %vm514 = vcmp.eq.s32.totalorder %v506, %v286
        %vm515 = vcmp.eq.s32.totalorder %v506, %v287
        %vm516 = vcmp.eq.s32.totalorder %v506, %v288
        %vm517 = vcmp.eq.s32.totalorder %v506, %v289
        %vm518 = vcmp.eq.s32.totalorder %v506, %v290
        %vm519 = vcmp.eq.s32.totalorder %v506, %v291
        %vm520 = vcmp.eq.s32.totalorder %v506, %v292
        %vm521 = vcmp.eq.s32.totalorder %v506, %v293
        %vm522 = vcmp.eq.s32.totalorder %v506, %v294
        %v523 = vsel %vm507, 1, 0
        %v524 = vsel %vm508, 1, 0
        %v525 = vsel %vm509, 1, 0
        %v526 = vsel %vm510, 1, 0
        %v527 = vsel %vm511, 1, 0
        %v528 = vsel %vm512, 1, 0
        %v529 = vsel %vm513, 1, 0
        %v530 = vsel %vm514, 1, 0
        %v531 = vsel %vm515, 1, 0
        %v532 = vsel %vm516, 1, 0
        %v533 = vsel %vm517, 1, 0
        %v534 = vsel %vm518, 1, 0
        %v535 = vsel %vm519, 1, 0
        %v536 = vsel %vm520, 1, 0
        %v537 = vsel %vm521, 1, 0
        %v538 = vsel %vm522, 1, 0
        %v539 = vcvt.s32.f32 %v523
        %v540 = vcvt.s32.f32 %v524
        %v541 = vcvt.s32.f32 %v525
        %v542 = vcvt.s32.f32 %v526
        %v543 = vcvt.s32.f32 %v527
        %v544 = vcvt.s32.f32 %v528
        %v545 = vcvt.s32.f32 %v529
        %v546 = vcvt.s32.f32 %v530
        %v547 = vcvt.s32.f32 %v531
        %v548 = vcvt.s32.f32 %v532
        %v549 = vcvt.s32.f32 %v533
        %v550 = vcvt.s32.f32 %v534
        %v551 = vcvt.s32.f32 %v535
        %v552 = vcvt.s32.f32 %v536
        %v553 = vcvt.s32.f32 %v537
        %v554 = vcvt.s32.f32 %v538
        %v555 = vlaneseq
        %v556 = vshrl.u32 %v555, 7
        %v557 = vsub.s32 5, %v556
        %v558 = vrot.slane %v242, %v557
        %vm559 = vcmp.eq.s32.totalorder %v558, %v279
        %vm560 = vcmp.eq.s32.totalorder %v558, %v280
        %vm561 = vcmp.eq.s32.totalorder %v558, %v281
        %vm562 = vcmp.eq.s32.totalorder %v558, %v282
        %vm563 = vcmp.eq.s32.totalorder %v558, %v283
        %vm564 = vcmp.eq.s32.totalorder %v558, %v284
        %vm565 = vcmp.eq.s32.totalorder %v558, %v285
        %vm566 = vcmp.eq.s32.totalorder %v558, %v286
        %vm567 = vcmp.eq.s32.totalorder %v558, %v287
        %vm568 = vcmp.eq.s32.totalorder %v558, %v288
        %vm569 = vcmp.eq.s32.totalorder %v558, %v289
        %vm570 = vcmp.eq.s32.totalorder %v558, %v290
        %vm571 = vcmp.eq.s32.totalorder %v558, %v291
        %vm572 = vcmp.eq.s32.totalorder %v558, %v292
        %vm573 = vcmp.eq.s32.totalorder %v558, %v293
        %vm574 = vcmp.eq.s32.totalorder %v558, %v294
        %v575 = vsel %vm559, 1, 0
        %v576 = vsel %vm560, 1, 0
        %v577 = vsel %vm561, 1, 0
        %v578 = vsel %vm562, 1, 0
        %v579 = vsel %vm563, 1, 0
        %v580 = vsel %vm564, 1, 0
        %v581 = vsel %vm565, 1, 0
        %v582 = vsel %vm566, 1, 0
        %v583 = vsel %vm567, 1, 0
        %v584 = vsel %vm568, 1, 0
        %v585 = vsel %vm569, 1, 0
        %v586 = vsel %vm570, 1, 0
        %v587 = vsel %vm571, 1, 0
        %v588 = vsel %vm572, 1, 0
        %v589 = vsel %vm573, 1, 0
        %v590 = vsel %vm574, 1, 0
        %v591 = vcvt.s32.f32 %v575
        %v592 = vcvt.s32.f32 %v576
        %v593 = vcvt.s32.f32 %v577
        %v594 = vcvt.s32.f32 %v578
        %v595 = vcvt.s32.f32 %v579
        %v596 = vcvt.s32.f32 %v580
        %v597 = vcvt.s32.f32 %v581
        %v598 = vcvt.s32.f32 %v582
        %v599 = vcvt.s32.f32 %v583
        %v600 = vcvt.s32.f32 %v584
        %v601 = vcvt.s32.f32 %v585
        %v602 = vcvt.s32.f32 %v586
        %v603 = vcvt.s32.f32 %v587
        %v604 = vcvt.s32.f32 %v588
        %v605 = vcvt.s32.f32 %v589
        %v606 = vcvt.s32.f32 %v590
        %v607 = vlaneseq
        %v608 = vshrl.u32 %v607, 7
        %v609 = vsub.s32 6, %v608
        %v610 = vrot.slane %v242, %v609
        %vm611 = vcmp.eq.s32.totalorder %v610, %v279
        %vm612 = vcmp.eq.s32.totalorder %v610, %v280
        %vm613 = vcmp.eq.s32.totalorder %v610, %v281
        %vm614 = vcmp.eq.s32.totalorder %v610, %v282
        %vm615 = vcmp.eq.s32.totalorder %v610, %v283
        %vm616 = vcmp.eq.s32.totalorder %v610, %v284
        %vm617 = vcmp.eq.s32.totalorder %v610, %v285
        %vm618 = vcmp.eq.s32.totalorder %v610, %v286
        %vm619 = vcmp.eq.s32.totalorder %v610, %v287
        %vm620 = vcmp.eq.s32.totalorder %v610, %v288
        %vm621 = vcmp.eq.s32.totalorder %v610, %v289
        %vm622 = vcmp.eq.s32.totalorder %v610, %v290
        %vm623 = vcmp.eq.s32.totalorder %v610, %v291
        %vm624 = vcmp.eq.s32.totalorder %v610, %v292
        %vm625 = vcmp.eq.s32.totalorder %v610, %v293
        %vm626 = vcmp.eq.s32.totalorder %v610, %v294
        %v627 = vsel %vm611, 1, 0
        %v628 = vsel %vm612, 1, 0
        %v629 = vsel %vm613, 1, 0
        %v630 = vsel %vm614, 1, 0
        %v631 = vsel %vm615, 1, 0
        %v632 = vsel %vm616, 1, 0
        %v633 = vsel %vm617, 1, 0
        %v634 = vsel %vm618, 1, 0
        %v635 = vsel %vm619, 1, 0
        %v636 = vsel %vm620, 1, 0
        %v637 = vsel %vm621, 1, 0
        %v638 = vsel %vm622, 1, 0
        %v639 = vsel %vm623, 1, 0
        %v640 = vsel %vm624, 1, 0
        %v641 = vsel %vm625, 1, 0
        %v642 = vsel %vm626, 1, 0
        %v643 = vcvt.s32.f32 %v627
        %v644 = vcvt.s32.f32 %v628
        %v645 = vcvt.s32.f32 %v629
        %v646 = vcvt.s32.f32 %v630
        %v647 = vcvt.s32.f32 %v631
        %v648 = vcvt.s32.f32 %v632
        %v649 = vcvt.s32.f32 %v633
        %v650 = vcvt.s32.f32 %v634
        %v651 = vcvt.s32.f32 %v635
        %v652 = vcvt.s32.f32 %v636
        %v653 = vcvt.s32.f32 %v637
        %v654 = vcvt.s32.f32 %v638
        %v655 = vcvt.s32.f32 %v639
        %v656 = vcvt.s32.f32 %v640
        %v657 = vcvt.s32.f32 %v641
        %v658 = vcvt.s32.f32 %v642
        %v659 = vlaneseq
        %v660 = vshrl.u32 %v659, 7
        %v661 = vsub.s32 7, %v660
        %v662 = vrot.slane %v242, %v661
        %vm663 = vcmp.eq.s32.totalorder %v662, %v279
        %vm664 = vcmp.eq.s32.totalorder %v662, %v280
        %vm665 = vcmp.eq.s32.totalorder %v662, %v281
        %vm666 = vcmp.eq.s32.totalorder %v662, %v282
        %vm667 = vcmp.eq.s32.totalorder %v662, %v283
        %vm668 = vcmp.eq.s32.totalorder %v662, %v284
        %vm669 = vcmp.eq.s32.totalorder %v662, %v285
        %vm670 = vcmp.eq.s32.totalorder %v662, %v286
        %vm671 = vcmp.eq.s32.totalorder %v662, %v287
        %vm672 = vcmp.eq.s32.totalorder %v662, %v288
        %vm673 = vcmp.eq.s32.totalorder %v662, %v289
        %vm674 = vcmp.eq.s32.totalorder %v662, %v290
        %vm675 = vcmp.eq.s32.totalorder %v662, %v291
        %vm676 = vcmp.eq.s32.totalorder %v662, %v292
        %vm677 = vcmp.eq.s32.totalorder %v662, %v293
        %vm678 = vcmp.eq.s32.totalorder %v662, %v294
        %v679 = vsel %vm663, 1, 0
        %v680 = vsel %vm664, 1, 0
        %v681 = vsel %vm665, 1, 0
        %v682 = vsel %vm666, 1, 0
        %v683 = vsel %vm667, 1, 0
        %v684 = vsel %vm668, 1, 0
        %v685 = vsel %vm669, 1, 0
        %v686 = vsel %vm670, 1, 0
        %v687 = vsel %vm671, 1, 0
        %v688 = vsel %vm672, 1, 0
        %v689 = vsel %vm673, 1, 0
        %v690 = vsel %vm674, 1, 0
        %v691 = vsel %vm675, 1, 0
        %v692 = vsel %vm676, 1, 0
        %v693 = vsel %vm677, 1, 0
        %v694 = vsel %vm678, 1, 0
        %v695 = vcvt.s32.f32 %v679
        %v696 = vcvt.s32.f32 %v680
        %v697 = vcvt.s32.f32 %v681
        %v698 = vcvt.s32.f32 %v682
        %v699 = vcvt.s32.f32 %v683
        %v700 = vcvt.s32.f32 %v684
        %v701 = vcvt.s32.f32 %v685
        %v702 = vcvt.s32.f32 %v686
        %v703 = vcvt.s32.f32 %v687
        %v704 = vcvt.s32.f32 %v688
        %v705 = vcvt.s32.f32 %v689
        %v706 = vcvt.s32.f32 %v690
        %v707 = vcvt.s32.f32 %v691
        %v708 = vcvt.s32.f32 %v692
        %v709 = vcvt.s32.f32 %v693
        %v710 = vcvt.s32.f32 %v694
        %v711 = vlaneseq
        %v712 = vshrl.u32 %v711, 7
        %v713 = vsub.s32 0, %v712
        %v714 = vrot.slane %v243, %v713
        %vm715 = vcmp.eq.s32.totalorder %v714, %v279
        %vm716 = vcmp.eq.s32.totalorder %v714, %v280
        %vm717 = vcmp.eq.s32.totalorder %v714, %v281
        %vm718 = vcmp.eq.s32.totalorder %v714, %v282
        %vm719 = vcmp.eq.s32.totalorder %v714, %v283
        %vm720 = vcmp.eq.s32.totalorder %v714, %v284
        %vm721 = vcmp.eq.s32.totalorder %v714, %v285
        %vm722 = vcmp.eq.s32.totalorder %v714, %v286
        %vm723 = vcmp.eq.s32.totalorder %v714, %v287
        %vm724 = vcmp.eq.s32.totalorder %v714, %v288
        %vm725 = vcmp.eq.s32.totalorder %v714, %v289
        %vm726 = vcmp.eq.s32.totalorder %v714, %v290
        %vm727 = vcmp.eq.s32.totalorder %v714, %v291
        %vm728 = vcmp.eq.s32.totalorder %v714, %v292
        %vm729 = vcmp.eq.s32.totalorder %v714, %v293
        %vm730 = vcmp.eq.s32.totalorder %v714, %v294
        %v731 = vsel %vm715, 1, 0
        %v732 = vsel %vm716, 1, 0
        %v733 = vsel %vm717, 1, 0
        %v734 = vsel %vm718, 1, 0
        %v735 = vsel %vm719, 1, 0
        %v736 = vsel %vm720, 1, 0
        %v737 = vsel %vm721, 1, 0
        %v738 = vsel %vm722, 1, 0
        %v739 = vsel %vm723, 1, 0
        %v740 = vsel %vm724, 1, 0
        %v741 = vsel %vm725, 1, 0
        %v742 = vsel %vm726, 1, 0
        %v743 = vsel %vm727, 1, 0
        %v744 = vsel %vm728, 1, 0
        %v745 = vsel %vm729, 1, 0
        %v746 = vsel %vm730, 1, 0
        %v747 = vcvt.s32.f32 %v731
        %v748 = vcvt.s32.f32 %v732
        %v749 = vcvt.s32.f32 %v733
        %v750 = vcvt.s32.f32 %v734
        %v751 = vcvt.s32.f32 %v735
        %v752 = vcvt.s32.f32 %v736
        %v753 = vcvt.s32.f32 %v737
        %v754 = vcvt.s32.f32 %v738
        %v755 = vcvt.s32.f32 %v739
        %v756 = vcvt.s32.f32 %v740
        %v757 = vcvt.s32.f32 %v741
        %v758 = vcvt.s32.f32 %v742
        %v759 = vcvt.s32.f32 %v743
        %v760 = vcvt.s32.f32 %v744
        %v761 = vcvt.s32.f32 %v745
        %v762 = vcvt.s32.f32 %v746
        %v763 = vadd.f32 %v331, %v383
        %v764 = vadd.f32 %v332, %v384
        %v765 = vadd.f32 %v333, %v385
        %v766 = vadd.f32 %v334, %v386
        %v767 = vadd.f32 %v335, %v387
        %v768 = vadd.f32 %v336, %v388
        %v769 = vadd.f32 %v337, %v389
        %v770 = vadd.f32 %v338, %v390
        %v771 = vadd.f32 %v339, %v391
        %v772 = vadd.f32 %v340, %v392
        %v773 = vadd.f32 %v341, %v393
        %v774 = vadd.f32 %v342, %v394
        %v775 = vadd.f32 %v343, %v395
        %v776 = vadd.f32 %v344, %v396
        %v777 = vadd.f32 %v345, %v397
        %v778 = vadd.f32 %v346, %v398
        %v779 = vadd.f32 %v435, %v487
        %v780 = vadd.f32 %v436, %v488
        %v781 = vadd.f32 %v437, %v489
        %v782 = vadd.f32 %v438, %v490
        %v783 = vadd.f32 %v439, %v491
        %v784 = vadd.f32 %v440, %v492
        %v785 = vadd.f32 %v441, %v493
        %v786 = vadd.f32 %v442, %v494
        %v787 = vadd.f32 %v443, %v495
        %v788 = vadd.f32 %v444, %v496
        %v789 = vadd.f32 %v445, %v497
        %v790 = vadd.f32 %v446, %v498
        %v791 = vadd.f32 %v447, %v499
        %v792 = vadd.f32 %v448, %v500
        %v793 = vadd.f32 %v449, %v501
        %v794 = vadd.f32 %v450, %v502
        %v795 = vadd.f32 %v539, %v591
        %v796 = vadd.f32 %v540, %v592
        %v797 = vadd.f32 %v541, %v593
        %v798 = vadd.f32 %v542, %v594
        %v799 = vadd.f32 %v543, %v595
        %v800 = vadd.f32 %v544, %v596
        %v801 = vadd.f32 %v545, %v597
        %v802 = vadd.f32 %v546, %v598
        %v803 = vadd.f32 %v547, %v599
        %v804 = vadd.f32 %v548, %v600
        %v805 = vadd.f32 %v549, %v601
        %v806 = vadd.f32 %v550, %v602
        %v807 = vadd.f32 %v551, %v603
        %v808 = vadd.f32 %v552, %v604
        %v809 = vadd.f32 %v553, %v605
        %v810 = vadd.f32 %v554, %v606
        %v811 = vadd.f32 %v643, %v695
        %v812 = vadd.f32 %v644, %v696
        %v813 = vadd.f32 %v645, %v697
        %v814 = vadd.f32 %v646, %v698
        %v815 = vadd.f32 %v647, %v699
        %v816 = vadd.f32 %v648, %v700
        %v817 = vadd.f32 %v649, %v701
        %v818 = vadd.f32 %v650, %v702
        %v819 = vadd.f32 %v651, %v703
        %v820 = vadd.f32 %v652, %v704
        %v821 = vadd.f32 %v653, %v705
        %v822 = vadd.f32 %v654, %v706
        %v823 = vadd.f32 %v655, %v707
        %v824 = vadd.f32 %v656, %v708
        %v825 = vadd.f32 %v657, %v709
        %v826 = vadd.f32 %v658, %v710
        %v827 = vadd.f32 %v763, %v779
        %v828 = vadd.f32 %v764, %v780
        %v829 = vadd.f32 %v765, %v781
        %v830 = vadd.f32 %v766, %v782
        %v831 = vadd.f32 %v767, %v783
        %v832 = vadd.f32 %v768, %v784
        %v833 = vadd.f32 %v769, %v785
        %v834 = vadd.f32 %v770, %v786
        %v835 = vadd.f32 %v771, %v787
        %v836 = vadd.f32 %v772, %v788
        %v837 = vadd.f32 %v773, %v789
        %v838 = vadd.f32 %v774, %v790
        %v839 = vadd.f32 %v775, %v791
        %v840 = vadd.f32 %v776, %v792
        %v841 = vadd.f32 %v777, %v793
        %v842 = vadd.f32 %v778, %v794
        %v843 = vadd.f32 %v795, %v811
        %v844 = vadd.f32 %v796, %v812
        %v845 = vadd.f32 %v797, %v813
        %v846 = vadd.f32 %v798, %v814
        %v847 = vadd.f32 %v799, %v815
        %v848 = vadd.f32 %v800, %v816
        %v849 = vadd.f32 %v801, %v817
        %v850 = vadd.f32 %v802, %v818
        %v851 = vadd.f32 %v803, %v819
        %v852 = vadd.f32 %v804, %v820
        %v853 = vadd.f32 %v805, %v821
        %v854 = vadd.f32 %v806, %v822
        %v855 = vadd.f32 %v807, %v823
        %v856 = vadd.f32 %v808, %v824
        %v857 = vadd.f32 %v809, %v825
        %v858 = vadd.f32 %v810, %v826
        %v859 = vadd.f32 %v827, %v843
        %v860 = vadd.f32 %v828, %v844
        %v861 = vadd.f32 %v829, %v845
        %v862 = vadd.f32 %v830, %v846
        %v863 = vadd.f32 %v831, %v847
        %v864 = vadd.f32 %v832, %v848
        %v865 = vadd.f32 %v833, %v849
        %v866 = vadd.f32 %v834, %v850
        %v867 = vadd.f32 %v835, %v851
        %v868 = vadd.f32 %v836, %v852
        %v869 = vadd.f32 %v837, %v853
        %v870 = vadd.f32 %v838, %v854
        %v871 = vadd.f32 %v839, %v855
        %v872 = vadd.f32 %v840, %v856
        %v873 = vadd.f32 %v841, %v857
        %v874 = vadd.f32 %v842, %v858
        %v875 = vadd.f32 %v859, %v747
        %v876 = vadd.f32 %v860, %v748
        %v877 = vadd.f32 %v861, %v749
        %v878 = vadd.f32 %v862, %v750
        %v879 = vadd.f32 %v863, %v751
        %v880 = vadd.f32 %v864, %v752
        %v881 = vadd.f32 %v865, %v753
        %v882 = vadd.f32 %v866, %v754
        %v883 = vadd.f32 %v867, %v755
        %v884 = vadd.f32 %v868, %v756
        %v885 = vadd.f32 %v869, %v757
        %v886 = vadd.f32 %v870, %v758
        %v887 = vadd.f32 %v871, %v759
        %v888 = vadd.f32 %v872, %v760
        %v889 = vadd.f32 %v873, %v761
        %v890 = vadd.f32 %v874, %v762
        %892 = vset.pattern.permute.xlu0 0
        %893 = vperm.xlu0 %892, %v244
        %v894 = vpop.permute.xlu0 %893
        %897 = vset.pattern.permute.xlu0 0
        %898 = vperm.xlu0 %897, %v245
        %v899 = vpop.permute.xlu0 %898
        %902 = vset.pattern.permute.xlu0 0
        %903 = vperm.xlu0 %902, %v246
        %v904 = vpop.permute.xlu0 %903
        %907 = vset.pattern.permute.xlu0 0
        %908 = vperm.xlu0 %907, %v247
        %v909 = vpop.permute.xlu0 %908
        %912 = vset.pattern.permute.xlu0 0
        %913 = vperm.xlu0 %912, %v248
        %v914 = vpop.permute.xlu0 %913
        %917 = vset.pattern.permute.xlu0 0
        %918 = vperm.xlu0 %917, %v249
        %v919 = vpop.permute.xlu0 %918
        %922 = vset.pattern.permute.xlu0 0
        %923 = vperm.xlu0 %922, %v250
        %v924 = vpop.permute.xlu0 %923
        %927 = vset.pattern.permute.xlu0 0
        %928 = vperm.xlu0 %927, %v251
        %v929 = vpop.permute.xlu0 %928
        %932 = vset.pattern.permute.xlu0 0
        %933 = vperm.xlu0 %932, %v252
        %v934 = vpop.permute.xlu0 %933
        %937 = vset.pattern.permute.xlu0 0
        %938 = vperm.xlu0 %937, %v253
        %v939 = vpop.permute.xlu0 %938
        %942 = vset.pattern.permute.xlu0 0
        %943 = vperm.xlu0 %942, %v254
        %v944 = vpop.permute.xlu0 %943
        %947 = vset.pattern.permute.xlu0 0
        %948 = vperm.xlu0 %947, %v255
        %v949 = vpop.permute.xlu0 %948
        %952 = vset.pattern.permute.xlu0 0
        %953 = vperm.xlu0 %952, %v256
        %v954 = vpop.permute.xlu0 %953
        %957 = vset.pattern.permute.xlu0 0
        %958 = vperm.xlu0 %957, %v257
        %v959 = vpop.permute.xlu0 %958
        %962 = vset.pattern.permute.xlu0 0
        %963 = vperm.xlu0 %962, %v258
        %v964 = vpop.permute.xlu0 %963
        %967 = vset.pattern.permute.xlu0 0
        %968 = vperm.xlu0 %967, %v259
        %v969 = vpop.permute.xlu0 %968
        %v971 = vmul.f32 %v875, %v894
        %v972 = vmul.f32 %v876, %v899
        %v973 = vmul.f32 %v877, %v904
        %v974 = vmul.f32 %v878, %v909
        %v975 = vmul.f32 %v879, %v914
        %v976 = vmul.f32 %v880, %v919
        %v977 = vmul.f32 %v881, %v924
        %v978 = vmul.f32 %v882, %v929
        %v979 = vmul.f32 %v883, %v934
        %v980 = vmul.f32 %v884, %v939
        %v981 = vmul.f32 %v885, %v944
        %v982 = vmul.f32 %v886, %v949
        %v983 = vmul.f32 %v887, %v954
        %v984 = vmul.f32 %v888, %v959
        %v985 = vmul.f32 %v889, %v964
        %v986 = vmul.f32 %v890, %v969
        %v987 = vadd.f32 %v971, %v972
        %v988 = vadd.f32 %v987, %v973
        %v989 = vadd.f32 %v988, %v974
        %v990 = vadd.f32 %v989, %v975
        %v991 = vadd.f32 %v990, %v976
        %v992 = vadd.f32 %v991, %v977
        %v993 = vadd.f32 %v992, %v978
        %v994 = vadd.f32 %v993, %v979
        %v995 = vadd.f32 %v994, %v980
        %v996 = vadd.f32 %v995, %v981
        %v997 = vadd.f32 %v996, %v982
        %v998 = vadd.f32 %v997, %v983
        %v999 = vadd.f32 %v998, %v984
        %v1000 = vadd.f32 %v999, %v985
        %v1001 = vadd.f32 %v1000, %v986
        %v1002 = vrot.slane %v1001, 4
        %v1003 = vadd.f32 %v1001, %v1002
        %v1004 = vrot.slane %v1003, 2
        %v1005 = vadd.f32 %v1003, %v1004
        %v1006 = vrot.slane %v1005, 1
        %v1007 = vadd.f32 %v1005, %v1006
        %p1008 = scmp.eq.s32.totalorder %s24, 0
        // Predicated region
        $region71: #{tpu_custom_call.1} parent=65 // pred_check
          %p1009 = pneg %p1008
        $region72: #{tpu_custom_call.1} parent=65 // pred_check_branch
          %1011 = sbr.rel (%p1009) target = $region74
        $region73: #{tpu_custom_call.1} parent=65 // pred_region
          %v1012 = vld [vmem:[#allocation2] sm:$0x1]
          %1014 = vset.pattern.permute.xlu0 0
          %1015 = vperm.xlu0 %1014, %v1012
          %v1016 = vpop.permute.xlu0 %1015
          %v1018 = vlaneseq
          %v1019 = vshrl.u32 %v1018, 7
          %v1020 = vsub.s32 0, %v1019
          %v1021 = vrot.slane %v1016, %v1020
          %1022 = vst [vmem:[%s235] sm:$0x1] %v1021
        $region74: #{tpu_custom_call.1} parent=65 // pred_fallthru
          _
        %v1023 = vld [vmem:[%s235] sm:$0x1]
        %v1024 = vadd.f32 %v1023, %v1007
        %1025 = vst [vmem:[%s235] sm:$0x1] %v1024
        %s1026 = sand.u32 %s112, 1
        %s1027 = scalar_lea.sflag [#allocation5], %s1026
        %s1028 = sand.u32 %s112, 1
        %s1029 = scalar_lea.vmem [#allocation4], %s1028
        // Predicated region
        $region75: #{tpu_custom_call.1} parent=65 // pred_check
          %p1030 = pneg %p122
        $region76: #{tpu_custom_call.1} parent=65 // pred_check_branch
          %1032 = sbr.rel (%p1030) target = $region78
        $region77: #{tpu_custom_call.1} parent=65 // pred_region
          %s1034 = ssub.s32 16, 16
          %1035 = vsyncadd %s1027, %s1034
          %s1036 = smul.addr %s23, 16
          %s1037 = scalar_lea.hbm %s3, %s1036
          %s1039 = sshll.u32 %s1029, 4
          %s1040 = int_to_ptr.vmem [resolvable:$true] %s1039
          %1042 = dma.vmem_to_hbm [thread:$0]  %s1040, 16, %s1037, %s1027
        $region78: #{tpu_custom_call.1} parent=65 // pred_fallthru
          _
      $region66: #{tpu_custom_call.1} parent=5 // pred_fallthru
        _
      %p1043 = scmp.le.s32.totalorder 2, %s14
      // Predicated region
      $region79: #{tpu_custom_call.1} parent=5 // pred_check
        %p1044 = pneg %p1043
      $region80: #{tpu_custom_call.1} parent=5 // pred_check_branch
        %1046 = sbr.rel (%p1044) target = $region82
      $region81: #{tpu_custom_call.1} parent=5 // pred_region
        %s1047 = ssub.s32 %s14, 2
        // Predicated region
        $region83: #{tpu_custom_call.1} parent=81 // pred_check
          %p1048 = pneg %p128
        $region84: #{tpu_custom_call.1} parent=81 // pred_check_branch
          %1050 = sbr.rel (%p1048) target = $region86
        $region85: #{tpu_custom_call.1} parent=81 // pred_region
          %s1051 = sand.u32 %s113, 1
          %s1052 = scalar_lea.sflag [#allocation5], %s1051
          %s1053 = sand.u32 %s113, 1
          %s1054 = scalar_lea.vmem [#allocation4], %s1053
          %1055 = dma.done %s1052, 16
        $region86: #{tpu_custom_call.1} parent=81 // pred_fallthru
          _
      $region82: #{tpu_custom_call.1} parent=5 // pred_fallthru
        _
    $region6: #{tpu_custom_call.1} parent=1 // loop_footer
      %s18 = sadd.s32 1, %s14
    $region7: #{tpu_custom_call.1} parent=1 // loop_footer_branch
      %13 = sbr.rel target = $region3
    $region8: #{tpu_custom_call.1} parent=1 // loop_exit
      _
    %1056 = vsyncpa [#allocation5], 1
    %s1057 = scalar_lea.sflag [#allocation5], 1
    %1058 = vsyncpa %s1057, 1

</llo_original>
